<compile_context>
chip_gen: v5e
topology: v5e:2x2
jax: 0.10.0
libtpu: 0.0.40
codegen_flags: <defaults>
</compile_context>

<pallas_src>
import functools
import math

import jax
import jax.numpy as jnp
from jax import lax
from jax.experimental import pallas as pl
from jax.experimental.pallas import tpu as pltpu


TRI_PERIOD = 0.1
TRI_AMPLITUDE = 1.0


def _round_up(x, m):
    return ((x + m - 1) // m) * m


# ---------------------------------------------------------------------------
# Stage 1: batch-independent weight generation (runs once per parameter set).
# One pallas_call per layer pair, tiled over n_i rows; output is the padded
# (P_i, P_j) effective weight with exact zeros in the padded rows/columns.
# ---------------------------------------------------------------------------
def _pcn_weight_kernel(l_ref, ln_ref, w_ref, *, n_i, n_j, tile_rows):
    r0 = pl.program_id(0) * tile_rows
    l = l_ref[...]          # (tile_rows, D), rows >= n_i are zero-padded
    ln = ln_ref[...]        # (P_j, D),       rows >= n_j are zero-padded
    d = l.shape[1]

    # Squared pairwise distances, transpose-free:
    #   ||l||^2 (sublane col)  +  ||ln||^2 (lane row via ones-matmul)  -  2 l.ln (MXU)
    sq_l = jnp.sum(l * l, axis=-1, keepdims=True)                         # (tile, 1)
    sq_ln_row = lax.dot_general(
        jnp.ones((1, d), jnp.float32), ln * ln,
        (((1,), (1,)), ((), ())),
        preferred_element_type=jnp.float32)                               # (1, P_j)
    cross = lax.dot_general(
        l, ln, (((1,), (1,)), ((), ())),
        preferred_element_type=jnp.float32)                               # (tile, P_j)
    d2 = jnp.maximum(sq_l + sq_ln_row - 2.0 * cross, 0.0)
    dist = jnp.sqrt(d2)

    # tri(x) * (1/sqrt(n_i)) folded into two compile-time constants:
    #   tri(x)*s = 0.5*a*s - (a/p)*s * | x mod 2p - p |
    scale = 1.0 / math.sqrt(n_i)
    c0 = 0.5 * TRI_AMPLITUDE * scale
    c1 = (TRI_AMPLITUDE / TRI_PERIOD) * scale
    w = c0 - c1 * jnp.abs(jnp.mod(dist, 2.0 * TRI_PERIOD) - TRI_PERIOD)

    # Zero the padded rows/cols so the zero-padding invariant of the fused
    # forward (padded z columns stay exactly 0) holds.
    row_ids = r0 + lax.broadcasted_iota(jnp.int32, w.shape, 0)
    col_ids = lax.broadcasted_iota(jnp.int32, w.shape, 1)
    mask = (row_ids < n_i) & (col_ids < n_j)
    w_ref[...] = jnp.where(mask, w, 0.0).astype(w_ref.dtype)


def pcn_precompute_padded_weights(layer_params, weight_dtype=jnp.float32):
    """Per-layer-pair pallas_calls producing padded (P_i, P_{i+1}) weights."""
    n_layers = len(layer_params)
    d = layer_params[0].shape[1]
    widths = [p.shape[0] for p in layer_params]
    pads = [_round_up(w, 128) for w in widths]
    padded_ls = [
        jnp.pad(p.astype(jnp.float32), ((0, pads[i] - widths[i]), (0, 0)))
        for i, p in enumerate(layer_params)
    ]

    weights = []
    for i in range(n_layers - 1):
        p_i, p_j = pads[i], pads[i + 1]
        tile = 256 if p_i % 256 == 0 else 128
        kernel = functools.partial(
            _pcn_weight_kernel, n_i=widths[i], n_j=widths[i + 1], tile_rows=tile)

        # VMEM budget: double-buffered l tile and output tile + single-buffered ln.
        need = 4 * (2 * tile * d + p_j * d + 2 * tile * p_j)
        vmem_limit = max(int(need * 1.5) + (2 << 20), 16 * 1024 * 1024)

        w = pl.pallas_call(
            kernel,
            out_shape=jax.ShapeDtypeStruct((p_i, p_j), weight_dtype),
            grid=(p_i // tile,),
            in_specs=[
                pl.BlockSpec((tile, d), lambda r: (r, 0)),
                pl.BlockSpec((p_j, d), lambda r: (0, 0),
                             pipeline_mode=pl.Buffered(1)),
            ],
            out_specs=pl.BlockSpec((tile, p_j), lambda r: (r, 0)),
            compiler_params=pltpu.CompilerParams(
                dimension_semantics=("parallel",),
                vmem_limit_bytes=vmem_limit),
        )(padded_ls[i], padded_ls[i + 1])
        weights.append(w)
    return weights, pads


def prepare_pcn(layer_params, layer_biases, weight_dtype=jnp.float32):
    """One-time prep: Pallas weight generation + lane-dense padded row biases."""
    weights, pads = pcn_precompute_padded_weights(layer_params, weight_dtype)
    biases = []
    for i in range(1, len(layer_params)):
        b_row = layer_biases[i].reshape(1, -1).astype(jnp.float32)   # (1, n_i)
        biases.append(jnp.pad(b_row, ((0, 0), (0, pads[i] - b_row.shape[1]))))
    return weights, biases


# ---------------------------------------------------------------------------
# Stage 2: fused forward pass — all layers in ONE pallas_call.
# ---------------------------------------------------------------------------
def _pcn_forward_kernel(*refs):
    """refs = (x, w_0, b_0, w_1, b_1, ..., out); layer loop unrolled, z kept on-chip."""
    x_ref, o_ref = refs[0], refs[-1]
    wb = refs[1:-1]
    n_pcn = len(wb) // 2
    z = x_ref[...]
    for i in range(n_pcn):
        w = wb[2 * i][...]
        b = wb[2 * i + 1][...]
        z = jnp.dot(z.astype(w.dtype), w, preferred_element_type=jnp.float32) + b
        if i < n_pcn - 1:
            z = jnp.maximum(z, 0.0)
    o_ref[...] = z.astype(o_ref.dtype)


def pick_batch_tile(batch):
    """Sublane-aligned batch tile; >= 2 grid steps for large batches (v7x megacore)."""
    if batch <= 128:
        return _round_up(batch, 8)
    return min(512, _round_up(-(-batch // 2), 8))


def pcn_forward_padded(x_pad, padded_weights, padded_biases, bt):
    """Fused PCN forward on pre-padded input; returns the padded output."""
    b_pad = x_pad.shape[0]
    n0_pad = padded_weights[0].shape[0]
    n_out_pad = padded_weights[-1].shape[1]
    assert x_pad.shape[1] == n0_pad and b_pad % bt == 0

    # x tile is double-buffered by default; bump to pl.Buffered(3) if profiling
    # shows exposed x DMA for very narrow layers.
    in_specs = [pl.BlockSpec((bt, n0_pad), lambda b: (b, 0))]
    operands = [x_pad]
    weight_bytes = 0
    for w, bia in zip(padded_weights, padded_biases):
        # Grid-invariant blocks -> single buffer (halves resident weight VMEM).
        in_specs.append(pl.BlockSpec(w.shape, lambda b: (0, 0),
                                     pipeline_mode=pl.Buffered(1)))
        in_specs.append(pl.BlockSpec(bia.shape, lambda b: (0, 0),
                                     pipeline_mode=pl.Buffered(1)))
        operands.extend([w, bia])
        weight_bytes += (w.size * w.dtype.itemsize + bia.size * bia.dtype.itemsize)

    max_width = max(w.shape[1] for w in padded_weights)
    act_bytes = 4 * bt * (2 * n0_pad + 2 * n_out_pad + max_width)
    vmem_limit = min(
        max(int((weight_bytes + act_bytes) * 1.25) + (2 << 20), 16 * 1024 * 1024),
        100 * 1024 * 1024)

    flops = 2 * b_pad * sum(w.shape[0] * w.shape[1] for w in padded_weights)
    bytes_accessed = 4 * (x_pad.size + b_pad * n_out_pad) + weight_bytes

    return pl.pallas_call(
        _pcn_forward_kernel,
        out_shape=jax.ShapeDtypeStruct((b_pad, n_out_pad), jnp.float32),
        grid=(b_pad // bt,),
        in_specs=in_specs,
        out_specs=pl.BlockSpec((bt, n_out_pad), lambda b: (b, 0)),
        compiler_params=pltpu.CompilerParams(
            dimension_semantics=("parallel",),
            vmem_limit_bytes=vmem_limit),
        cost_estimate=pl.CostEstimate(
            flops=flops, transcendentals=0, bytes_accessed=bytes_accessed),
    )(*operands)


# ---------------------------------------------------------------------------
# Pure-JAX reference mirroring the PyTorch module, and synthetic init.
# ---------------------------------------------------------------------------
def _tri_ref(x):
    p, a = TRI_PERIOD, TRI_AMPLITUDE
    return a / p * (p - jnp.abs(jnp.mod(x, 2.0 * p) - p) - p / 2.0)


def pcn_forward_ref(x, layer_params, layer_biases):
    z = x
    n_layers = len(layer_params)
    for i in range(n_layers - 1):
        l = layer_params[i]
        lnext = layer_params[i + 1]
        diff = l[:, None, :] - lnext[None, :, :]
        dist = jnp.sqrt(jnp.sum(diff * diff, axis=-1))
        w = _tri_ref(dist) / jnp.sqrt(jnp.float32(l.shape[0]))
        z = z @ w + layer_biases[i + 1].T
        if i < n_layers - 2:
            z = jax.nn.relu(z)
    return z


def init_pcn_params(key, layers, dimensions):
    """Deterministic synthetic params matching torch.rand-based init shapes."""
    params, biases = [], []
    for l in layers:
        key, k1, k2 = jax.random.split(key, 3)
        params.append(jax.random.uniform(k1, (l, dimensions), jnp.float32, -1.0, 1.0))
        biases.append(jax.random.uniform(k2, (l, 1), jnp.float32, -0.1, 0.1))
    return params, biases


if __name__ == "__main__":
    layers = [32, 64, 16]   # >= 2 PCN layers
    dimensions = 20
    batch = 4

    key = jax.random.PRNGKey(0)
    key, kx = jax.random.split(key)
    x = jax.random.uniform(kx, (batch, layers[0]), jnp.float32, -1.0, 1.0)

    layer_params, layer_biases = init_pcn_params(key, layers, dimensions)

    # One-time prep: weights depend only on layer_params, not on x / batch.
    # (weight_dtype=jnp.bfloat16 halves weight VMEM but loosens accuracy; keep f32 here.)
    padded_w, padded_b = prepare_pcn(layer_params, layer_biases)

    # Hot-path prep done once, outside the jitted forward: tile choice + x padding.
    bt = pick_batch_tile(batch)
    b_pad = _round_up(batch, bt)
    n0_pad = padded_w[0].shape[0]
    x_pad = jnp.pad(x, ((0, b_pad - batch), (0, n0_pad - x.shape[1])))

    forward = jax.jit(functools.partial(pcn_forward_padded, bt=bt))
    out_pad = jax.block_until_ready(forward(x_pad, padded_w, padded_b))
    out = out_pad[:batch, :layers[-1]]

    ref = pcn_forward_ref(x, layer_params, layer_biases)
    assert out.shape == (batch, layers[-1])
    # Tolerance accounts for the x10 triangle-wave slope amplifying tiny f32
    # rounding differences in the MXU-based pairwise-distance computation.
    assert jnp.allclose(out, ref, atol=2e-4, rtol=2e-4), "mismatch vs reference"

    print("KERNEL_OK")
</pallas_src>

<mosaic_0001>
module attributes {stable_mosaic.version = 11 : i64} {
  func.func @_pcn_weight_kernel(%arg0: i32, %arg1: memref<128x20xf32, #tpu.memory_space<vmem>>, %arg2: memref<128x20xf32, #tpu.memory_space<vmem>>, %arg3: memref<128x128xf32, #tpu.memory_space<vmem>>) attributes {dimension_semantics = [#tpu.dimension_semantics<parallel>], iteration_bounds = array<i64: 1>, scalar_prefetch = 0 : i64, scratch_operands = 0 : i64, tpu.core_type = #tpu.core_type<tc>, window_params = [{transform_indices = @transform_0, window_bounds = array<i64: 128, 20>}, {pipeline_mode = #tpu.pipeline_mode<synchronous>, transform_indices = @transform_1, window_bounds = array<i64: 128, 20>}, {transform_indices = @transform_2, window_bounds = array<i64: 128, 128>}]} {
    %c128_i32 = arith.constant 128 : i32
    %0 = arith.muli %arg0, %c128_i32 : i32
    %c0 = arith.constant 0 : index
    %c0_0 = arith.constant 0 : index
    %1 = vector.load %arg1[%c0, %c0_0] : memref<128x20xf32, #tpu.memory_space<vmem>>, vector<128x20xf32>
    %c0_1 = arith.constant 0 : index
    %c0_2 = arith.constant 0 : index
    %2 = vector.load %arg2[%c0_1, %c0_2] : memref<128x20xf32, #tpu.memory_space<vmem>>, vector<128x20xf32>
    %3 = arith.mulf %1, %1 : vector<128x20xf32>
    %cst = arith.constant dense<0.000000e+00> : vector<128xf32>
    %4 = vector.multi_reduction <add>, %3, %cst [1] : vector<128x20xf32> to vector<128xf32>
    %5 = vector.shape_cast %4 : vector<128xf32> to vector<128x1xf32>
    %cst_3 = arith.constant 1.000000e+00 : f32
    %6 = vector.broadcast %cst_3 : f32 to vector<1x20xf32>
    %7 = arith.mulf %2, %2 : vector<128x20xf32>
    %cst_4 = arith.constant dense<0.000000e+00> : vector<1x128xf32>
    %8 = tpu.matmul %6, %7, %cst_4 {dimension_numbers = #tpu.dot_dimension_numbers<[1], [1], [0], [0], [0, 0, 1, 0], [], []>} : vector<1x20xf32>, vector<128x20xf32>, vector<1x128xf32> -> vector<1x128xf32>
    %cst_5 = arith.constant dense<0.000000e+00> : vector<128x128xf32>
    %9 = tpu.matmul %1, %2, %cst_5 {dimension_numbers = #tpu.dot_dimension_numbers<[1], [1], [0], [0], [0, 0, 1, 0], [], []>} : vector<128x20xf32>, vector<128x20xf32>, vector<128x128xf32> -> vector<128x128xf32>
    %10 = vector.broadcast %5 : vector<128x1xf32> to vector<128x128xf32>
    %11 = vector.broadcast %8 : vector<1x128xf32> to vector<128x128xf32>
    %12 = arith.addf %10, %11 : vector<128x128xf32>
    %cst_6 = arith.constant 2.000000e+00 : f32
    %13 = vector.broadcast %cst_6 : f32 to vector<128x128xf32>
    %14 = arith.mulf %13, %9 : vector<128x128xf32>
    %15 = arith.subf %12, %14 : vector<128x128xf32>
    %cst_7 = arith.constant 0.000000e+00 : f32
    %16 = vector.broadcast %cst_7 : f32 to vector<128x128xf32>
    %17 = arith.maximumf %15, %16 : vector<128x128xf32>
    %18 = math.sqrt %17 : vector<128x128xf32>
    %cst_8 = arith.constant 2.000000e-01 : f32
    %19 = vector.broadcast %cst_8 : f32 to vector<128x128xf32>
    %20 = arith.remf %18, %19 : vector<128x128xf32>
    %cst_9 = arith.constant 0.000000e+00 : f32
    %21 = vector.broadcast %cst_9 : f32 to vector<128x128xf32>
    %22 = arith.cmpf one, %20, %21 : vector<128x128xf32>
    %cst_10 = arith.constant 0.000000e+00 : f32
    %23 = vector.broadcast %cst_10 : f32 to vector<128x128xf32>
    %24 = arith.cmpf olt, %20, %23 : vector<128x128xf32>
    %cst_11 = arith.constant 0.000000e+00 : f32
    %25 = arith.cmpf olt, %cst_8, %cst_11 : f32
    %26 = vector.broadcast %25 : i1 to vector<128x128xi1>
    %27 = vector.broadcast %26 : vector<128x128xi1> to vector<128x128xi1>
    %28 = arith.xori %24, %27 : vector<128x128xi1>
    %29 = arith.andi %28, %22 : vector<128x128xi1>
    %30 = vector.broadcast %cst_8 : f32 to vector<128x128xf32>
    %31 = arith.addf %20, %30 : vector<128x128xf32>
    %32 = arith.select %29, %31, %20 : vector<128x128xi1>, vector<128x128xf32>
    %cst_12 = arith.constant 1.000000e-01 : f32
    %33 = vector.broadcast %cst_12 : f32 to vector<128x128xf32>
    %34 = arith.subf %32, %33 : vector<128x128xf32>
    %35 = math.absf %34 : vector<128x128xf32>
    %cst_13 = arith.constant 1.76776695 : f32
    %36 = vector.broadcast %cst_13 : f32 to vector<128x128xf32>
    %37 = arith.mulf %36, %35 : vector<128x128xf32>
    %cst_14 = arith.constant 0.0883883461 : f32
    %38 = vector.broadcast %cst_14 : f32 to vector<128x128xf32>
    %39 = arith.subf %38, %37 : vector<128x128xf32>
    %40 = tpu.iota {dimensions = array<i32: 0>} : vector<128x128xi32>
    %41 = vector.broadcast %0 : i32 to vector<128x128xi32>
    %42 = arith.addi %41, %40 : vector<128x128xi32>
    %43 = tpu.iota {dimensions = array<i32: 1>} : vector<128x128xi32>
    %c32_i32 = arith.constant 32 : i32
    %44 = vector.broadcast %c32_i32 : i32 to vector<128x128xi32>
    %45 = arith.cmpi slt, %42, %44 : vector<128x128xi32>
    %c64_i32 = arith.constant 64 : i32
    %46 = vector.broadcast %c64_i32 : i32 to vector<128x128xi32>
    %47 = arith.cmpi slt, %43, %46 : vector<128x128xi32>
    %48 = arith.andi %45, %47 : vector<128x128xi1>
    %cst_15 = arith.constant 0.000000e+00 : f32
    %49 = vector.broadcast %cst_15 : f32 to vector<128x128xf32>
    %50 = arith.select %48, %39, %49 : vector<128x128xi1>, vector<128x128xf32>
    %c0_16 = arith.constant 0 : index
    %c0_17 = arith.constant 0 : index
    %51 = vector.load %arg3[%c0_16, %c0_17] : memref<128x128xf32, #tpu.memory_space<vmem>>, vector<128x128xf32>
    tpu.vector_store %arg3[%c0_16, %c0_17], %50 {strides = array<i32>} : memref<128x128xf32, #tpu.memory_space<vmem>>, vector<128x128xf32>,
    return
  }
  func.func @transform_0(%arg0: i32) -> (i32, i32) {
    %c0_i32 = arith.constant 0 : i32
    %c0_i32_0 = arith.constant 0 : i32
    return %arg0, %c0_i32 : i32, i32
  }
  func.func @transform_1(%arg0: i32) -> (i32, i32) {
    %c0_i32 = arith.constant 0 : i32
    %c0_i32_0 = arith.constant 0 : i32
    %c0_i32_1 = arith.constant 0 : i32
    return %c0_i32, %c0_i32_0 : i32, i32
  }
  func.func @transform_2(%arg0: i32) -> (i32, i32) {
    %c0_i32 = arith.constant 0 : i32
    %c0_i32_0 = arith.constant 0 : i32
    return %arg0, %c0_i32 : i32, i32
  }
}

</mosaic_0001>

<llo_original>
// kernel: tpu_custom_call.1
$region0: #{tpu_custom_call.1}
  #allocation0 [shape = 'u32[]', space=smem, size = 0x4, offset = 0x4, fixed_abs, tag = 'smem constant byte address 0x4 - core index']
  #allocation1 [shape = 'u32[72,128]{1,0:T(1,128)}', space=vmem, size = 0x9000, scoped, tag = 'internal scratch']
  %s0 = inlined_call_operand.vmem [shape: f32[128,20], index: 0, kind: input, shape index: {}]
  %s1 = inlined_call_operand.vmem [shape: f32[128,20], index: 1, kind: input, shape index: {}]
  %s2 = inlined_call_operand.hbm [shape: f32[128,128], index: 2, kind: output, shape index: {}]
  %s3 = sld [smem:[#allocation0]]
  $region18: #{tpu_custom_call.1} parent=0
    _
  %s5 = ssub.s32 1, %s3
  %s6 = scalar_select 0, %s5, %s3
  $region1: #{tpu_custom_call.1} parent=0
    #allocation2 [shape = 'u8[65536]{0}', space=vmem, size = 0x10000, scoped, tag = 'output window, operand 0, single buffered']
    #allocation3 [shape = 's32[1]{0}', space=sflag, size = 0x4, scoped, tag = 'scoped memory for tpu_custom_call.1']
    %7 = vsyncpa [#allocation3], 0
    // Predicated region
    $region2: #{tpu_custom_call.1} parent=1 // pred_check
      _
    $region3: #{tpu_custom_call.1} parent=1 // pred_check_branch
      %9 = sbr.rel (0) target = $region5
    $region4: #{tpu_custom_call.1} parent=1 // pred_region
      _
    $region5: #{tpu_custom_call.1} parent=1 // pred_fallthru
      _
    // Predicated region
    $region6: #{tpu_custom_call.1} parent=1 // pred_check
      _
    $region7: #{tpu_custom_call.1} parent=1 // pred_check_branch
      %11 = sbr.rel (0) target = $region9
    $region8: #{tpu_custom_call.1} parent=1 // pred_region
      _
    $region9: #{tpu_custom_call.1} parent=1 // pred_fallthru
      _
    %s12 = smul.u32 0, 128
    %v13 = vld [vmem:[%s0] sm:$0xff]
    %v14 = vld [vmem:[%s0 + $0x8] sm:$0xff]
    %v15 = vld [vmem:[%s0 + $0x10] sm:$0xff]
    %v16 = vld [vmem:[%s0 + $0x18] sm:$0xff]
    %v17 = vld [vmem:[%s0 + $0x20] sm:$0xff]
    %v18 = vld [vmem:[%s0 + $0x28] sm:$0xff]
    %v19 = vld [vmem:[%s0 + $0x30] sm:$0xff]
    %v20 = vld [vmem:[%s0 + $0x38] sm:$0xff]
    %v21 = vld [vmem:[%s0 + $0x40] sm:$0xff]
    %v22 = vld [vmem:[%s0 + $0x48] sm:$0xff]
    %v23 = vld [vmem:[%s0 + $0x50] sm:$0xff]
    %v24 = vld [vmem:[%s0 + $0x58] sm:$0xff]
    %v25 = vld [vmem:[%s0 + $0x60] sm:$0xff]
    %v26 = vld [vmem:[%s0 + $0x68] sm:$0xff]
    %v27 = vld [vmem:[%s0 + $0x70] sm:$0xff]
    %v28 = vld [vmem:[%s0 + $0x78] sm:$0xff]
    %v29 = vld [vmem:[%s1] sm:$0xff]
    %v30 = vld [vmem:[%s1 + $0x8] sm:$0xff]
    %v31 = vld [vmem:[%s1 + $0x10] sm:$0xff]
    %v32 = vld [vmem:[%s1 + $0x18] sm:$0xff]
    %v33 = vld [vmem:[%s1 + $0x20] sm:$0xff]
    %v34 = vld [vmem:[%s1 + $0x28] sm:$0xff]
    %v35 = vld [vmem:[%s1 + $0x30] sm:$0xff]
    %v36 = vld [vmem:[%s1 + $0x38] sm:$0xff]
    %v37 = vld [vmem:[%s1 + $0x40] sm:$0xff]
    %v38 = vld [vmem:[%s1 + $0x48] sm:$0xff]
    %v39 = vld [vmem:[%s1 + $0x50] sm:$0xff]
    %v40 = vld [vmem:[%s1 + $0x58] sm:$0xff]
    %v41 = vld [vmem:[%s1 + $0x60] sm:$0xff]
    %v42 = vld [vmem:[%s1 + $0x68] sm:$0xff]
    %v43 = vld [vmem:[%s1 + $0x70] sm:$0xff]
    %v44 = vld [vmem:[%s1 + $0x78] sm:$0xff]
    %v45 = vmul.f32 %v13, %v13
    %v46 = vmul.f32 %v14, %v14
    %v47 = vmul.f32 %v15, %v15
    %v48 = vmul.f32 %v16, %v16
    %v49 = vmul.f32 %v17, %v17
    %v50 = vmul.f32 %v18, %v18
    %v51 = vmul.f32 %v19, %v19
    %v52 = vmul.f32 %v20, %v20
    %v53 = vmul.f32 %v21, %v21
    %v54 = vmul.f32 %v22, %v22
    %v55 = vmul.f32 %v23, %v23
    %v56 = vmul.f32 %v24, %v24
    %v57 = vmul.f32 %v25, %v25
    %v58 = vmul.f32 %v26, %v26
    %v59 = vmul.f32 %v27, %v27
    %v60 = vmul.f32 %v28, %v28
    %vm61 = vcmask 162816
    %v62 = vsel %vm61, %v45, 0.0
    %63 = vadd.xlane.f32.xlu0 %v62
    %v64 = vpop.xlane.xlu0 %63
    %v65 = vsel %vm61, %v46, 0.0
    %66 = vadd.xlane.f32.xlu0 %v65
    %v67 = vpop.xlane.xlu0 %66
    %v68 = vsel %vm61, %v47, 0.0
    %69 = vadd.xlane.f32.xlu0 %v68
    %v70 = vpop.xlane.xlu0 %69
    %v71 = vsel %vm61, %v48, 0.0
    %72 = vadd.xlane.f32.xlu0 %v71
    %v73 = vpop.xlane.xlu0 %72
    %v74 = vsel %vm61, %v49, 0.0
    %75 = vadd.xlane.f32.xlu0 %v74
    %v76 = vpop.xlane.xlu0 %75
    %v77 = vsel %vm61, %v50, 0.0
    %78 = vadd.xlane.f32.xlu0 %v77
    %v79 = vpop.xlane.xlu0 %78
    %v80 = vsel %vm61, %v51, 0.0
    %81 = vadd.xlane.f32.xlu0 %v80
    %v82 = vpop.xlane.xlu0 %81
    %v83 = vsel %vm61, %v52, 0.0
    %84 = vadd.xlane.f32.xlu0 %v83
    %v85 = vpop.xlane.xlu0 %84
    %v86 = vsel %vm61, %v53, 0.0
    %87 = vadd.xlane.f32.xlu0 %v86
    %v88 = vpop.xlane.xlu0 %87
    %v89 = vsel %vm61, %v54, 0.0
    %90 = vadd.xlane.f32.xlu0 %v89
    %v91 = vpop.xlane.xlu0 %90
    %v92 = vsel %vm61, %v55, 0.0
    %93 = vadd.xlane.f32.xlu0 %v92
    %v94 = vpop.xlane.xlu0 %93
    %v95 = vsel %vm61, %v56, 0.0
    %96 = vadd.xlane.f32.xlu0 %v95
    %v97 = vpop.xlane.xlu0 %96
    %v98 = vsel %vm61, %v57, 0.0
    %99 = vadd.xlane.f32.xlu0 %v98
    %v100 = vpop.xlane.xlu0 %99
    %v101 = vsel %vm61, %v58, 0.0
    %102 = vadd.xlane.f32.xlu0 %v101
    %v103 = vpop.xlane.xlu0 %102
    %v104 = vsel %vm61, %v59, 0.0
    %105 = vadd.xlane.f32.xlu0 %v104
    %v106 = vpop.xlane.xlu0 %105
    %v107 = vsel %vm61, %v60, 0.0
    %108 = vadd.xlane.f32.xlu0 %v107
    %v109 = vpop.xlane.xlu0 %108
    %v110 = vmul.f32 %v29, %v29
    %v111 = vmul.f32 %v30, %v30
    %v112 = vmul.f32 %v31, %v31
    %v113 = vmul.f32 %v32, %v32
    %v114 = vmul.f32 %v33, %v33
    %v115 = vmul.f32 %v34, %v34
    %v116 = vmul.f32 %v35, %v35
    %v117 = vmul.f32 %v36, %v36
    %v118 = vmul.f32 %v37, %v37
    %v119 = vmul.f32 %v38, %v38
    %v120 = vmul.f32 %v39, %v39
    %v121 = vmul.f32 %v40, %v40
    %v122 = vmul.f32 %v41, %v41
    %v123 = vmul.f32 %v42, %v42
    %v124 = vmul.f32 %v43, %v43
    %v125 = vmul.f32 %v44, %v44
    %v127 = vsel %vm61, 1.0, 0
    %v130 = vsel %vm61, %v110, 0
    %v133 = vsel %vm61, %v111, 0
    %v136 = vsel %vm61, %v112, 0
    %v139 = vsel %vm61, %v113, 0
    %v142 = vsel %vm61, %v114, 0
    %v145 = vsel %vm61, %v115, 0
    %v148 = vsel %vm61, %v116, 0
    %v151 = vsel %vm61, %v117, 0
    %v154 = vsel %vm61, %v118, 0
    %v157 = vsel %vm61, %v119, 0
    %v160 = vsel %vm61, %v120, 0
    %v163 = vsel %vm61, %v121, 0
    %v166 = vsel %vm61, %v122, 0
    %v169 = vsel %vm61, %v123, 0
    %v172 = vsel %vm61, %v124, 0
    %v175 = vsel %vm61, %v125, 0
    %177 = vmatpush.xpose.msra.mxu0 %v175
    %178 = vmatpush.xpose.msra.mxu0 %v172
    %179 = vmatpush.xpose.msra.mxu0 %v169
    %180 = vmatpush.xpose.msra.mxu0 %v166
    %181 = vmatpush.xpose.msra.mxu0 %v163
    %182 = vmatpush.xpose.msra.mxu0 %v160
    %183 = vmatpush.xpose.msra.mxu0 %v157
    %184 = vmatpush.xpose.msra.mxu0 %v154
    %185 = vmatpush.xpose.msra.mxu0 %v151
    %186 = vmatpush.xpose.msra.mxu0 %v148
    %187 = vmatpush.xpose.msra.mxu0 %v145
    %188 = vmatpush.xpose.msra.mxu0 %v142
    %189 = vmatpush.xpose.msra.mxu0 %v139
    %190 = vmatpush.xpose.msra.mxu0 %v136
    %191 = vmatpush.xpose.msra.mxu0 %v133
    %192 = vmatpush.xpose.msra.mxu0 %v130
    %193 = vmatmul.f32.gmra.mxu0 %v127
    %v194 = vpop.f32.mrf.mxu0
    %v195 = vadd.f32 0.0, %v194
    %196 = vdwg.mxu0
    %v198 = vsel %vm61, %v13, 0
    %v201 = vsel %vm61, %v14, 0
    %v204 = vsel %vm61, %v15, 0
    %v207 = vsel %vm61, %v16, 0
    %v210 = vsel %vm61, %v17, 0
    %v213 = vsel %vm61, %v18, 0
    %v216 = vsel %vm61, %v19, 0
    %v219 = vsel %vm61, %v20, 0
    %v222 = vsel %vm61, %v21, 0
    %v225 = vsel %vm61, %v22, 0
    %v228 = vsel %vm61, %v23, 0
    %v231 = vsel %vm61, %v24, 0
    %v234 = vsel %vm61, %v25, 0
    %v237 = vsel %vm61, %v26, 0
    %v240 = vsel %vm61, %v27, 0
    %v243 = vsel %vm61, %v28, 0
    %v246 = vsel %vm61, %v29, 0
    %v249 = vsel %vm61, %v30, 0
    %v252 = vsel %vm61, %v31, 0
    %v255 = vsel %vm61, %v32, 0
    %v258 = vsel %vm61, %v33, 0
    %v261 = vsel %vm61, %v34, 0
    %v264 = vsel %vm61, %v35, 0
    %v267 = vsel %vm61, %v36, 0
    %v270 = vsel %vm61, %v37, 0
    %v273 = vsel %vm61, %v38, 0
    %v276 = vsel %vm61, %v39, 0
    %v279 = vsel %vm61, %v40, 0
    %v282 = vsel %vm61, %v41, 0
    %v285 = vsel %vm61, %v42, 0
    %v288 = vsel %vm61, %v43, 0
    %v291 = vsel %vm61, %v44, 0
    %293 = vmatpush.xpose.msra.mxu0 %v291
    %294 = vmatpush.xpose.msra.mxu0 %v288
    %295 = vmatpush.xpose.msra.mxu0 %v285
    %296 = vmatpush.xpose.msra.mxu0 %v282
    %297 = vmatpush.xpose.msra.mxu0 %v279
    %298 = vmatpush.xpose.msra.mxu0 %v276
    %299 = vmatpush.xpose.msra.mxu0 %v273
    %300 = vmatpush.xpose.msra.mxu0 %v270
    %301 = vmatpush.xpose.msra.mxu0 %v267
    %302 = vmatpush.xpose.msra.mxu0 %v264
    %303 = vmatpush.xpose.msra.mxu0 %v261
    %304 = vmatpush.xpose.msra.mxu0 %v258
    %305 = vmatpush.xpose.msra.mxu0 %v255
    %306 = vmatpush.xpose.msra.mxu0 %v252
    %307 = vmatpush.xpose.msra.mxu0 %v249
    %308 = vmatpush.xpose.msra.mxu0 %v246
    %309 = vmatmul.f32.gmra.mxu0 %v198
    %v310 = vpop.f32.mrf.mxu0
    %v311 = vadd.f32 0.0, %v310
    %312 = vmatmul.f32.gmra.mxu0 %v201
    %v313 = vpop.f32.mrf.mxu0
    %v314 = vadd.f32 0.0, %v313
    %315 = vmatmul.f32.gmra.mxu0 %v204
    %v316 = vpop.f32.mrf.mxu0
    %v317 = vadd.f32 0.0, %v316
    %318 = vmatmul.f32.gmra.mxu0 %v207
    %v319 = vpop.f32.mrf.mxu0
    %v320 = vadd.f32 0.0, %v319
    %321 = vmatmul.f32.gmra.mxu0 %v210
    %v322 = vpop.f32.mrf.mxu0
    %v323 = vadd.f32 0.0, %v322
    %324 = vmatmul.f32.gmra.mxu0 %v213
    %v325 = vpop.f32.mrf.mxu0
    %v326 = vadd.f32 0.0, %v325
    %327 = vmatmul.f32.gmra.mxu0 %v216
    %v328 = vpop.f32.mrf.mxu0
    %v329 = vadd.f32 0.0, %v328
    %330 = vmatmul.f32.gmra.mxu0 %v219
    %v331 = vpop.f32.mrf.mxu0
    %v332 = vadd.f32 0.0, %v331
    %333 = vmatmul.f32.gmra.mxu0 %v222
    %v334 = vpop.f32.mrf.mxu0
    %v335 = vadd.f32 0.0, %v334
    %336 = vmatmul.f32.gmra.mxu0 %v225
    %v337 = vpop.f32.mrf.mxu0
    %v338 = vadd.f32 0.0, %v337
    %339 = vmatmul.f32.gmra.mxu0 %v228
    %v340 = vpop.f32.mrf.mxu0
    %v341 = vadd.f32 0.0, %v340
    %342 = vmatmul.f32.gmra.mxu0 %v231
    %v343 = vpop.f32.mrf.mxu0
    %v344 = vadd.f32 0.0, %v343
    %345 = vmatmul.f32.gmra.mxu0 %v234
    %v346 = vpop.f32.mrf.mxu0
    %v347 = vadd.f32 0.0, %v346
    %348 = vmatmul.f32.gmra.mxu0 %v237
    %v349 = vpop.f32.mrf.mxu0
    %v350 = vadd.f32 0.0, %v349
    %351 = vmatmul.f32.gmra.mxu0 %v240
    %v352 = vpop.f32.mrf.mxu0
    %v353 = vadd.f32 0.0, %v352
    %354 = vmatmul.f32.gmra.mxu0 %v243
    %v355 = vpop.f32.mrf.mxu0
    %v356 = vadd.f32 0.0, %v355
    %357 = vdwg.mxu0
    %v358 = vperm.slane %v195, 0
    %v359 = vadd.f32 %v64, %v358
    %v360 = vadd.f32 %v67, %v358
    %v361 = vadd.f32 %v70, %v358
    %v362 = vadd.f32 %v73, %v358
    %v363 = vadd.f32 %v76, %v358
    %v364 = vadd.f32 %v79, %v358
    %v365 = vadd.f32 %v82, %v358
    %v366 = vadd.f32 %v85, %v358
    %v367 = vadd.f32 %v88, %v358
    %v368 = vadd.f32 %v91, %v358
    %v369 = vadd.f32 %v94, %v358
    %v370 = vadd.f32 %v97, %v358
    %v371 = vadd.f32 %v100, %v358
    %v372 = vadd.f32 %v103, %v358
    %v373 = vadd.f32 %v106, %v358
    %v374 = vadd.f32 %v109, %v358
    %v375 = vmul.f32 %v311, 2.0
    %v376 = vmul.f32 %v314, 2.0
    %v377 = vmul.f32 %v317, 2.0
    %v378 = vmul.f32 %v320, 2.0
    %v379 = vmul.f32 %v323, 2.0
    %v380 = vmul.f32 %v326, 2.0
    %v381 = vmul.f32 %v329, 2.0
    %v382 = vmul.f32 %v332, 2.0
    %v383 = vmul.f32 %v335, 2.0
    %v384 = vmul.f32 %v338, 2.0
    %v385 = vmul.f32 %v341, 2.0
    %v386 = vmul.f32 %v344, 2.0
    %v387 = vmul.f32 %v347, 2.0
    %v388 = vmul.f32 %v350, 2.0
    %v389 = vmul.f32 %v353, 2.0
    %v390 = vmul.f32 %v356, 2.0
    %v391 = vsub.f32 %v359, %v375
    %v392 = vsub.f32 %v360, %v376
    %v393 = vsub.f32 %v361, %v377
    %v394 = vsub.f32 %v362, %v378
    %v395 = vsub.f32 %v363, %v379
    %v396 = vsub.f32 %v364, %v380
    %v397 = vsub.f32 %v365, %v381
    %v398 = vsub.f32 %v366, %v382
    %v399 = vsub.f32 %v367, %v383
    %v400 = vsub.f32 %v368, %v384
    %v401 = vsub.f32 %v369, %v385
    %v402 = vsub.f32 %v370, %v386
    %v403 = vsub.f32 %v371, %v387
    %v404 = vsub.f32 %v372, %v388
    %v405 = vsub.f32 %v373, %v389
    %v406 = vsub.f32 %v374, %v390
    %v407 = vmax.f32 %v391, 0.0
    %v408 = vmax.f32 %v392, 0.0
    %v409 = vmax.f32 %v393, 0.0
    %v410 = vmax.f32 %v394, 0.0
    %v411 = vmax.f32 %v395, 0.0
    %v412 = vmax.f32 %v396, 0.0
    %v413 = vmax.f32 %v397, 0.0
    %v414 = vmax.f32 %v398, 0.0
    %v415 = vmax.f32 %v399, 0.0
    %v416 = vmax.f32 %v400, 0.0
    %v417 = vmax.f32 %v401, 0.0
    %v418 = vmax.f32 %v402, 0.0
    %v419 = vmax.f32 %v403, 0.0
    %v420 = vmax.f32 %v404, 0.0
    %v421 = vmax.f32 %v405, 0.0
    %v422 = vmax.f32 %v406, 0.0
    %v423 = vrsqrt.pop %v407
    %v424 = vmul.f32 %v423, %v407
    %v425 = vmul.f32 %v424, %v423
    %v426 = vmul.f32 0.5, %v425
    %v427 = vsub.f32 1.5, %v426
    %v428 = vmul.f32 %v423, %v427
    %v429 = vmul.f32 %v407, %v428
    %vm430 = vcmp.eq.f32.partialorder %v407, inf
    %v431 = vsel %vm430, %v407, %v429
    %vm432 = vcmp.eq.f32.partialorder %v407, 0.0
    %v433 = vand.u32 %v407, 2147483648
    %v434 = vsel %vm432, %v433, %v431
    %v435 = vrsqrt.pop %v408
    %v436 = vmul.f32 %v435, %v408
    %v437 = vmul.f32 %v436, %v435
    %v438 = vmul.f32 0.5, %v437
    %v439 = vsub.f32 1.5, %v438
    %v440 = vmul.f32 %v435, %v439
    %v441 = vmul.f32 %v408, %v440
    %vm442 = vcmp.eq.f32.partialorder %v408, inf
    %v443 = vsel %vm442, %v408, %v441
    %vm444 = vcmp.eq.f32.partialorder %v408, 0.0
    %v445 = vand.u32 %v408, 2147483648
    %v446 = vsel %vm444, %v445, %v443
    %v447 = vrsqrt.pop %v409
    %v448 = vmul.f32 %v447, %v409
    %v449 = vmul.f32 %v448, %v447
    %v450 = vmul.f32 0.5, %v449
    %v451 = vsub.f32 1.5, %v450
    %v452 = vmul.f32 %v447, %v451
    %v453 = vmul.f32 %v409, %v452
    %vm454 = vcmp.eq.f32.partialorder %v409, inf
    %v455 = vsel %vm454, %v409, %v453
    %vm456 = vcmp.eq.f32.partialorder %v409, 0.0
    %v457 = vand.u32 %v409, 2147483648
    %v458 = vsel %vm456, %v457, %v455
    %v459 = vrsqrt.pop %v410
    %v460 = vmul.f32 %v459, %v410
    %v461 = vmul.f32 %v460, %v459
    %v462 = vmul.f32 0.5, %v461
    %v463 = vsub.f32 1.5, %v462
    %v464 = vmul.f32 %v459, %v463
    %v465 = vmul.f32 %v410, %v464
    %vm466 = vcmp.eq.f32.partialorder %v410, inf
    %v467 = vsel %vm466, %v410, %v465
    %vm468 = vcmp.eq.f32.partialorder %v410, 0.0
    %v469 = vand.u32 %v410, 2147483648
    %v470 = vsel %vm468, %v469, %v467
    %v471 = vrsqrt.pop %v411
    %v472 = vmul.f32 %v471, %v411
    %v473 = vmul.f32 %v472, %v471
    %v474 = vmul.f32 0.5, %v473
    %v475 = vsub.f32 1.5, %v474
    %v476 = vmul.f32 %v471, %v475
    %v477 = vmul.f32 %v411, %v476
    %vm478 = vcmp.eq.f32.partialorder %v411, inf
    %v479 = vsel %vm478, %v411, %v477
    %vm480 = vcmp.eq.f32.partialorder %v411, 0.0
    %v481 = vand.u32 %v411, 2147483648
    %v482 = vsel %vm480, %v481, %v479
    %v483 = vrsqrt.pop %v412
    %v484 = vmul.f32 %v483, %v412
    %v485 = vmul.f32 %v484, %v483
    %v486 = vmul.f32 0.5, %v485
    %v487 = vsub.f32 1.5, %v486
    %v488 = vmul.f32 %v483, %v487
    %v489 = vmul.f32 %v412, %v488
    %vm490 = vcmp.eq.f32.partialorder %v412, inf
    %v491 = vsel %vm490, %v412, %v489
    %vm492 = vcmp.eq.f32.partialorder %v412, 0.0
    %v493 = vand.u32 %v412, 2147483648
    %v494 = vsel %vm492, %v493, %v491
    %v495 = vrsqrt.pop %v413
    %v496 = vmul.f32 %v495, %v413
    %v497 = vmul.f32 %v496, %v495
    %v498 = vmul.f32 0.5, %v497
    %v499 = vsub.f32 1.5, %v498
    %v500 = vmul.f32 %v495, %v499
    %v501 = vmul.f32 %v413, %v500
    %vm502 = vcmp.eq.f32.partialorder %v413, inf
    %v503 = vsel %vm502, %v413, %v501
    %vm504 = vcmp.eq.f32.partialorder %v413, 0.0
    %v505 = vand.u32 %v413, 2147483648
    %v506 = vsel %vm504, %v505, %v503
    %v507 = vrsqrt.pop %v414
    %v508 = vmul.f32 %v507, %v414
    %v509 = vmul.f32 %v508, %v507
    %v510 = vmul.f32 0.5, %v509
    %v511 = vsub.f32 1.5, %v510
    %v512 = vmul.f32 %v507, %v511
    %v513 = vmul.f32 %v414, %v512
    %vm514 = vcmp.eq.f32.partialorder %v414, inf
    %v515 = vsel %vm514, %v414, %v513
    %vm516 = vcmp.eq.f32.partialorder %v414, 0.0
    %v517 = vand.u32 %v414, 2147483648
    %v518 = vsel %vm516, %v517, %v515
    %v519 = vrsqrt.pop %v415
    %v520 = vmul.f32 %v519, %v415
    %v521 = vmul.f32 %v520, %v519
    %v522 = vmul.f32 0.5, %v521
    %v523 = vsub.f32 1.5, %v522
    %v524 = vmul.f32 %v519, %v523
    %v525 = vmul.f32 %v415, %v524
    %vm526 = vcmp.eq.f32.partialorder %v415, inf
    %v527 = vsel %vm526, %v415, %v525
    %vm528 = vcmp.eq.f32.partialorder %v415, 0.0
    %v529 = vand.u32 %v415, 2147483648
    %v530 = vsel %vm528, %v529, %v527
    %v531 = vrsqrt.pop %v416
    %v532 = vmul.f32 %v531, %v416
    %v533 = vmul.f32 %v532, %v531
    %v534 = vmul.f32 0.5, %v533
    %v535 = vsub.f32 1.5, %v534
    %v536 = vmul.f32 %v531, %v535
    %v537 = vmul.f32 %v416, %v536
    %vm538 = vcmp.eq.f32.partialorder %v416, inf
    %v539 = vsel %vm538, %v416, %v537
    %vm540 = vcmp.eq.f32.partialorder %v416, 0.0
    %v541 = vand.u32 %v416, 2147483648
    %v542 = vsel %vm540, %v541, %v539
    %v543 = vrsqrt.pop %v417
    %v544 = vmul.f32 %v543, %v417
    %v545 = vmul.f32 %v544, %v543
    %v546 = vmul.f32 0.5, %v545
    %v547 = vsub.f32 1.5, %v546
    %v548 = vmul.f32 %v543, %v547
    %v549 = vmul.f32 %v417, %v548
    %vm550 = vcmp.eq.f32.partialorder %v417, inf
    %v551 = vsel %vm550, %v417, %v549
    %vm552 = vcmp.eq.f32.partialorder %v417, 0.0
    %v553 = vand.u32 %v417, 2147483648
    %v554 = vsel %vm552, %v553, %v551
    %v555 = vrsqrt.pop %v418
    %v556 = vmul.f32 %v555, %v418
    %v557 = vmul.f32 %v556, %v555
    %v558 = vmul.f32 0.5, %v557
    %v559 = vsub.f32 1.5, %v558
    %v560 = vmul.f32 %v555, %v559
    %v561 = vmul.f32 %v418, %v560
    %vm562 = vcmp.eq.f32.partialorder %v418, inf
    %v563 = vsel %vm562, %v418, %v561
    %vm564 = vcmp.eq.f32.partialorder %v418, 0.0
    %v565 = vand.u32 %v418, 2147483648
    %v566 = vsel %vm564, %v565, %v563
    %v567 = vrsqrt.pop %v419
    %v568 = vmul.f32 %v567, %v419
    %v569 = vmul.f32 %v568, %v567
    %v570 = vmul.f32 0.5, %v569
    %v571 = vsub.f32 1.5, %v570
    %v572 = vmul.f32 %v567, %v571
    %v573 = vmul.f32 %v419, %v572
    %vm574 = vcmp.eq.f32.partialorder %v419, inf
    %v575 = vsel %vm574, %v419, %v573
    %vm576 = vcmp.eq.f32.partialorder %v419, 0.0
    %v577 = vand.u32 %v419, 2147483648
    %v578 = vsel %vm576, %v577, %v575
    %v579 = vrsqrt.pop %v420
    %v580 = vmul.f32 %v579, %v420
    %v581 = vmul.f32 %v580, %v579
    %v582 = vmul.f32 0.5, %v581
    %v583 = vsub.f32 1.5, %v582
    %v584 = vmul.f32 %v579, %v583
    %v585 = vmul.f32 %v420, %v584
    %vm586 = vcmp.eq.f32.partialorder %v420, inf
    %v587 = vsel %vm586, %v420, %v585
    %vm588 = vcmp.eq.f32.partialorder %v420, 0.0
    %v589 = vand.u32 %v420, 2147483648
    %v590 = vsel %vm588, %v589, %v587
    %v591 = vrsqrt.pop %v421
    %v592 = vmul.f32 %v591, %v421
    %v593 = vmul.f32 %v592, %v591
    %v594 = vmul.f32 0.5, %v593
    %v595 = vsub.f32 1.5, %v594
    %v596 = vmul.f32 %v591, %v595
    %v597 = vmul.f32 %v421, %v596
    %vm598 = vcmp.eq.f32.partialorder %v421, inf
    %v599 = vsel %vm598, %v421, %v597
    %vm600 = vcmp.eq.f32.partialorder %v421, 0.0
    %v601 = vand.u32 %v421, 2147483648
    %v602 = vsel %vm600, %v601, %v599
    %v603 = vrsqrt.pop %v422
    %v604 = vmul.f32 %v603, %v422
    %v605 = vmul.f32 %v604, %v603
    %v606 = vmul.f32 0.5, %v605
    %v607 = vsub.f32 1.5, %v606
    %v608 = vmul.f32 %v603, %v607
    %v609 = vmul.f32 %v422, %v608
    %vm610 = vcmp.eq.f32.partialorder %v422, inf
    %v611 = vsel %vm610, %v422, %v609
    %vm612 = vcmp.eq.f32.partialorder %v422, 0.0
    %v613 = vand.u32 %v422, 2147483648
    %v614 = vsel %vm612, %v613, %v611
    %v615 = vand.u32 2147483647, %v434
    %v616 = vrcp.pop 0.2
    %v617 = vmul.f32 0.2, %v616
    %v618 = vsub.f32 1.0, %v617
    %v619 = vmul.f32 %v616, %v618
    %v620 = vadd.f32 %v616, %v619
    %vm621 = vweird.f32 %v616
    %v622 = vsel %vm621, %v616, %v620
    %v623 = vmul.f32 %v615, %v622
    %v624 = vfloor.f32 %v623
    %v625 = vmul.f32 %v624, 0.2
    %v626 = vsub.f32 %v615, %v625
    %vm627 = vcmp.eq.f32.partialorder %v626, 0.2
    %v628 = vsel %vm627, 0.0, %v626
    %v629 = vand.u32 2147483647, %v628
    %v630 = vand.u32 %v434, 2147483648
    %v631 = vor.u32 %v629, %v630
    %v632 = vand.u32 2147483647, %v446
    %v633 = vrcp.pop 0.2
    %v634 = vmul.f32 0.2, %v633
    %v635 = vsub.f32 1.0, %v634
    %v636 = vmul.f32 %v633, %v635
    %v637 = vadd.f32 %v633, %v636
    %vm638 = vweird.f32 %v633
    %v639 = vsel %vm638, %v633, %v637
    %v640 = vmul.f32 %v632, %v639
    %v641 = vfloor.f32 %v640
    %v642 = vmul.f32 %v641, 0.2
    %v643 = vsub.f32 %v632, %v642
    %vm644 = vcmp.eq.f32.partialorder %v643, 0.2
    %v645 = vsel %vm644, 0.0, %v643
    %v646 = vand.u32 2147483647, %v645
    %v647 = vand.u32 %v446, 2147483648
    %v648 = vor.u32 %v646, %v647
    %v649 = vand.u32 2147483647, %v458
    %v650 = vrcp.pop 0.2
    %v651 = vmul.f32 0.2, %v650
    %v652 = vsub.f32 1.0, %v651
    %v653 = vmul.f32 %v650, %v652
    %v654 = vadd.f32 %v650, %v653
    %vm655 = vweird.f32 %v650
    %v656 = vsel %vm655, %v650, %v654
    %v657 = vmul.f32 %v649, %v656
    %v658 = vfloor.f32 %v657
    %v659 = vmul.f32 %v658, 0.2
    %v660 = vsub.f32 %v649, %v659
    %vm661 = vcmp.eq.f32.partialorder %v660, 0.2
    %v662 = vsel %vm661, 0.0, %v660
    %v663 = vand.u32 2147483647, %v662
    %v664 = vand.u32 %v458, 2147483648
    %v665 = vor.u32 %v663, %v664
    %v666 = vand.u32 2147483647, %v470
    %v667 = vrcp.pop 0.2
    %v668 = vmul.f32 0.2, %v667
    %v669 = vsub.f32 1.0, %v668
    %v670 = vmul.f32 %v667, %v669
    %v671 = vadd.f32 %v667, %v670
    %vm672 = vweird.f32 %v667
    %v673 = vsel %vm672, %v667, %v671
    %v674 = vmul.f32 %v666, %v673
    %v675 = vfloor.f32 %v674
    %v676 = vmul.f32 %v675, 0.2
    %v677 = vsub.f32 %v666, %v676
    %vm678 = vcmp.eq.f32.partialorder %v677, 0.2
    %v679 = vsel %vm678, 0.0, %v677
    %v680 = vand.u32 2147483647, %v679
    %v681 = vand.u32 %v470, 2147483648
    %v682 = vor.u32 %v680, %v681
    %v683 = vand.u32 2147483647, %v482
    %v684 = vrcp.pop 0.2
    %v685 = vmul.f32 0.2, %v684
    %v686 = vsub.f32 1.0, %v685
    %v687 = vmul.f32 %v684, %v686
    %v688 = vadd.f32 %v684, %v687
    %vm689 = vweird.f32 %v684
    %v690 = vsel %vm689, %v684, %v688
    %v691 = vmul.f32 %v683, %v690
    %v692 = vfloor.f32 %v691
    %v693 = vmul.f32 %v692, 0.2
    %v694 = vsub.f32 %v683, %v693
    %vm695 = vcmp.eq.f32.partialorder %v694, 0.2
    %v696 = vsel %vm695, 0.0, %v694
    %v697 = vand.u32 2147483647, %v696
    %v698 = vand.u32 %v482, 2147483648
    %v699 = vor.u32 %v697, %v698
    %v700 = vand.u32 2147483647, %v494
    %v701 = vrcp.pop 0.2
    %v702 = vmul.f32 0.2, %v701
    %v703 = vsub.f32 1.0, %v702
    %v704 = vmul.f32 %v701, %v703
    %v705 = vadd.f32 %v701, %v704
    %vm706 = vweird.f32 %v701
    %v707 = vsel %vm706, %v701, %v705
    %v708 = vmul.f32 %v700, %v707
    %v709 = vfloor.f32 %v708
    %v710 = vmul.f32 %v709, 0.2
    %v711 = vsub.f32 %v700, %v710
    %vm712 = vcmp.eq.f32.partialorder %v711, 0.2
    %v713 = vsel %vm712, 0.0, %v711
    %v714 = vand.u32 2147483647, %v713
    %v715 = vand.u32 %v494, 2147483648
    %v716 = vor.u32 %v714, %v715
    %v717 = vand.u32 2147483647, %v506
    %v718 = vrcp.pop 0.2
    %v719 = vmul.f32 0.2, %v718
    %v720 = vsub.f32 1.0, %v719
    %v721 = vmul.f32 %v718, %v720
    %v722 = vadd.f32 %v718, %v721
    %vm723 = vweird.f32 %v718
    %v724 = vsel %vm723, %v718, %v722
    %v725 = vmul.f32 %v717, %v724
    %v726 = vfloor.f32 %v725
    %v727 = vmul.f32 %v726, 0.2
    %v728 = vsub.f32 %v717, %v727
    %vm729 = vcmp.eq.f32.partialorder %v728, 0.2
    %v730 = vsel %vm729, 0.0, %v728
    %v731 = vand.u32 2147483647, %v730
    %v732 = vand.u32 %v506, 2147483648
    %v733 = vor.u32 %v731, %v732
    %v734 = vand.u32 2147483647, %v518
    %v735 = vrcp.pop 0.2
    %v736 = vmul.f32 0.2, %v735
    %v737 = vsub.f32 1.0, %v736
    %v738 = vmul.f32 %v735, %v737
    %v739 = vadd.f32 %v735, %v738
    %vm740 = vweird.f32 %v735
    %v741 = vsel %vm740, %v735, %v739
    %v742 = vmul.f32 %v734, %v741
    %v743 = vfloor.f32 %v742
    %v744 = vmul.f32 %v743, 0.2
    %v745 = vsub.f32 %v734, %v744
    %vm746 = vcmp.eq.f32.partialorder %v745, 0.2
    %v747 = vsel %vm746, 0.0, %v745
    %v748 = vand.u32 2147483647, %v747
    %v749 = vand.u32 %v518, 2147483648
    %v750 = vor.u32 %v748, %v749
    %v751 = vand.u32 2147483647, %v530
    %v752 = vrcp.pop 0.2
    %v753 = vmul.f32 0.2, %v752
    %v754 = vsub.f32 1.0, %v753
    %v755 = vmul.f32 %v752, %v754
    %v756 = vadd.f32 %v752, %v755
    %vm757 = vweird.f32 %v752
    %v758 = vsel %vm757, %v752, %v756
    %v759 = vmul.f32 %v751, %v758
    %v760 = vfloor.f32 %v759
    %v761 = vmul.f32 %v760, 0.2
    %v762 = vsub.f32 %v751, %v761
    %vm763 = vcmp.eq.f32.partialorder %v762, 0.2
    %v764 = vsel %vm763, 0.0, %v762
    %v765 = vand.u32 2147483647, %v764
    %v766 = vand.u32 %v530, 2147483648
    %v767 = vor.u32 %v765, %v766
    %v768 = vand.u32 2147483647, %v542
    %v769 = vrcp.pop 0.2
    %v770 = vmul.f32 0.2, %v769
    %v771 = vsub.f32 1.0, %v770
    %v772 = vmul.f32 %v769, %v771
    %v773 = vadd.f32 %v769, %v772
    %vm774 = vweird.f32 %v769
    %v775 = vsel %vm774, %v769, %v773
    %v776 = vmul.f32 %v768, %v775
    %v777 = vfloor.f32 %v776
    %v778 = vmul.f32 %v777, 0.2
    %v779 = vsub.f32 %v768, %v778
    %vm780 = vcmp.eq.f32.partialorder %v779, 0.2
    %v781 = vsel %vm780, 0.0, %v779
    %v782 = vand.u32 2147483647, %v781
    %v783 = vand.u32 %v542, 2147483648
    %v784 = vor.u32 %v782, %v783
    %v785 = vand.u32 2147483647, %v554
    %v786 = vrcp.pop 0.2
    %v787 = vmul.f32 0.2, %v786
    %v788 = vsub.f32 1.0, %v787
    %v789 = vmul.f32 %v786, %v788
    %v790 = vadd.f32 %v786, %v789
    %vm791 = vweird.f32 %v786
    %v792 = vsel %vm791, %v786, %v790
    %v793 = vmul.f32 %v785, %v792
    %v794 = vfloor.f32 %v793
    %v795 = vmul.f32 %v794, 0.2
    %v796 = vsub.f32 %v785, %v795
    %vm797 = vcmp.eq.f32.partialorder %v796, 0.2
    %v798 = vsel %vm797, 0.0, %v796
    %v799 = vand.u32 2147483647, %v798
    %v800 = vand.u32 %v554, 2147483648
    %v801 = vor.u32 %v799, %v800
    %v802 = vand.u32 2147483647, %v566
    %v803 = vrcp.pop 0.2
    %v804 = vmul.f32 0.2, %v803
    %v805 = vsub.f32 1.0, %v804
    %v806 = vmul.f32 %v803, %v805
    %v807 = vadd.f32 %v803, %v806
    %vm808 = vweird.f32 %v803
    %v809 = vsel %vm808, %v803, %v807
    %v810 = vmul.f32 %v802, %v809
    %v811 = vfloor.f32 %v810
    %v812 = vmul.f32 %v811, 0.2
    %v813 = vsub.f32 %v802, %v812
    %vm814 = vcmp.eq.f32.partialorder %v813, 0.2
    %v815 = vsel %vm814, 0.0, %v813
    %v816 = vand.u32 2147483647, %v815
    %v817 = vand.u32 %v566, 2147483648
    %v818 = vor.u32 %v816, %v817
    %v819 = vand.u32 2147483647, %v578
    %v820 = vrcp.pop 0.2
    %v821 = vmul.f32 0.2, %v820
    %v822 = vsub.f32 1.0, %v821
    %v823 = vmul.f32 %v820, %v822
    %v824 = vadd.f32 %v820, %v823
    %vm825 = vweird.f32 %v820
    %v826 = vsel %vm825, %v820, %v824
    %v827 = vmul.f32 %v819, %v826
    %v828 = vfloor.f32 %v827
    %v829 = vmul.f32 %v828, 0.2
    %v830 = vsub.f32 %v819, %v829
    %vm831 = vcmp.eq.f32.partialorder %v830, 0.2
    %v832 = vsel %vm831, 0.0, %v830
    %v833 = vand.u32 2147483647, %v832
    %v834 = vand.u32 %v578, 2147483648
    %v835 = vor.u32 %v833, %v834
    %v836 = vand.u32 2147483647, %v590
    %v837 = vrcp.pop 0.2
    %v838 = vmul.f32 0.2, %v837
    %v839 = vsub.f32 1.0, %v838
    %v840 = vmul.f32 %v837, %v839
    %v841 = vadd.f32 %v837, %v840
    %vm842 = vweird.f32 %v837
    %v843 = vsel %vm842, %v837, %v841
    %v844 = vmul.f32 %v836, %v843
    %v845 = vfloor.f32 %v844
    %v846 = vmul.f32 %v845, 0.2
    %v847 = vsub.f32 %v836, %v846
    %vm848 = vcmp.eq.f32.partialorder %v847, 0.2
    %v849 = vsel %vm848, 0.0, %v847
    %v850 = vand.u32 2147483647, %v849
    %v851 = vand.u32 %v590, 2147483648
    %v852 = vor.u32 %v850, %v851
    %v853 = vand.u32 2147483647, %v602
    %v854 = vrcp.pop 0.2
    %v855 = vmul.f32 0.2, %v854
    %v856 = vsub.f32 1.0, %v855
    %v857 = vmul.f32 %v854, %v856
    %v858 = vadd.f32 %v854, %v857
    %vm859 = vweird.f32 %v854
    %v860 = vsel %vm859, %v854, %v858
    %v861 = vmul.f32 %v853, %v860
    %v862 = vfloor.f32 %v861
    %v863 = vmul.f32 %v862, 0.2
    %v864 = vsub.f32 %v853, %v863
    %vm865 = vcmp.eq.f32.partialorder %v864, 0.2
    %v866 = vsel %vm865, 0.0, %v864
    %v867 = vand.u32 2147483647, %v866
    %v868 = vand.u32 %v602, 2147483648
    %v869 = vor.u32 %v867, %v868
    %v870 = vand.u32 2147483647, %v614
    %v871 = vrcp.pop 0.2
    %v872 = vmul.f32 0.2, %v871
    %v873 = vsub.f32 1.0, %v872
    %v874 = vmul.f32 %v871, %v873
    %v875 = vadd.f32 %v871, %v874
    %vm876 = vweird.f32 %v871
    %v877 = vsel %vm876, %v871, %v875
    %v878 = vmul.f32 %v870, %v877
    %v879 = vfloor.f32 %v878
    %v880 = vmul.f32 %v879, 0.2
    %v881 = vsub.f32 %v870, %v880
    %vm882 = vcmp.eq.f32.partialorder %v881, 0.2
    %v883 = vsel %vm882, 0.0, %v881
    %v884 = vand.u32 2147483647, %v883
    %v885 = vand.u32 %v614, 2147483648
    %v886 = vor.u32 %v884, %v885
    %vm887 = vcmp.ne.f32.partialorder %v631, 0.0
    %vm888 = vcmp.ne.f32.partialorder %v648, 0.0
    %vm889 = vcmp.ne.f32.partialorder %v665, 0.0
    %vm890 = vcmp.ne.f32.partialorder %v682, 0.0
    %vm891 = vcmp.ne.f32.partialorder %v699, 0.0
    %vm892 = vcmp.ne.f32.partialorder %v716, 0.0
    %vm893 = vcmp.ne.f32.partialorder %v733, 0.0
    %vm894 = vcmp.ne.f32.partialorder %v750, 0.0
    %vm895 = vcmp.ne.f32.partialorder %v767, 0.0
    %vm896 = vcmp.ne.f32.partialorder %v784, 0.0
    %vm897 = vcmp.ne.f32.partialorder %v801, 0.0
    %vm898 = vcmp.ne.f32.partialorder %v818, 0.0
    %vm899 = vcmp.ne.f32.partialorder %v835, 0.0
    %vm900 = vcmp.ne.f32.partialorder %v852, 0.0
    %vm901 = vcmp.ne.f32.partialorder %v869, 0.0
    %vm902 = vcmp.ne.f32.partialorder %v886, 0.0
    %vm903 = vcmp.lt.f32.partialorder %v631, 0.0
    %vm904 = vcmp.lt.f32.partialorder %v648, 0.0
    %vm905 = vcmp.lt.f32.partialorder %v665, 0.0
    %vm906 = vcmp.lt.f32.partialorder %v682, 0.0
    %vm907 = vcmp.lt.f32.partialorder %v699, 0.0
    %vm908 = vcmp.lt.f32.partialorder %v716, 0.0
    %vm909 = vcmp.lt.f32.partialorder %v733, 0.0
    %vm910 = vcmp.lt.f32.partialorder %v750, 0.0
    %vm911 = vcmp.lt.f32.partialorder %v767, 0.0
    %vm912 = vcmp.lt.f32.partialorder %v784, 0.0
    %vm913 = vcmp.lt.f32.partialorder %v801, 0.0
    %vm914 = vcmp.lt.f32.partialorder %v818, 0.0
    %vm915 = vcmp.lt.f32.partialorder %v835, 0.0
    %vm916 = vcmp.lt.f32.partialorder %v852, 0.0
    %vm917 = vcmp.lt.f32.partialorder %v869, 0.0
    %vm918 = vcmp.lt.f32.partialorder %v886, 0.0
    %vm919 = vmand %vm903, %vm887
    %vm920 = vmand %vm904, %vm888
    %vm921 = vmand %vm905, %vm889
    %vm922 = vmand %vm906, %vm890
    %vm923 = vmand %vm907, %vm891
    %vm924 = vmand %vm908, %vm892
    %vm925 = vmand %vm909, %vm893
    %vm926 = vmand %vm910, %vm894
    %vm927 = vmand %vm911, %vm895
    %vm928 = vmand %vm912, %vm896
    %vm929 = vmand %vm913, %vm897
    %vm930 = vmand %vm914, %vm898
    %vm931 = vmand %vm915, %vm899
    %vm932 = vmand %vm916, %vm900
    %vm933 = vmand %vm917, %vm901
    %vm934 = vmand %vm918, %vm902
    %v935 = vadd.f32 %v631, 0.2
    %v936 = vadd.f32 %v648, 0.2
    %v937 = vadd.f32 %v665, 0.2
    %v938 = vadd.f32 %v682, 0.2
    %v939 = vadd.f32 %v699, 0.2
    %v940 = vadd.f32 %v716, 0.2
    %v941 = vadd.f32 %v733, 0.2
    %v942 = vadd.f32 %v750, 0.2
    %v943 = vadd.f32 %v767, 0.2
    %v944 = vadd.f32 %v784, 0.2
    %v945 = vadd.f32 %v801, 0.2
    %v946 = vadd.f32 %v818, 0.2
    %v947 = vadd.f32 %v835, 0.2
    %v948 = vadd.f32 %v852, 0.2
    %v949 = vadd.f32 %v869, 0.2
    %v950 = vadd.f32 %v886, 0.2
    %v951 = vsel %vm919, %v935, %v631
    %v952 = vsel %vm920, %v936, %v648
    %v953 = vsel %vm921, %v937, %v665
    %v954 = vsel %vm922, %v938, %v682
    %v955 = vsel %vm923, %v939, %v699
    %v956 = vsel %vm924, %v940, %v716
    %v957 = vsel %vm925, %v941, %v733
    %v958 = vsel %vm926, %v942, %v750
    %v959 = vsel %vm927, %v943, %v767
    %v960 = vsel %vm928, %v944, %v784
    %v961 = vsel %vm929, %v945, %v801
    %v962 = vsel %vm930, %v946, %v818
    %v963 = vsel %vm931, %v947, %v835
    %v964 = vsel %vm932, %v948, %v852
    %v965 = vsel %vm933, %v949, %v869
    %v966 = vsel %vm934, %v950, %v886
    %v967 = vsub.f32 %v951, 0.1
    %v968 = vsub.f32 %v952, 0.1
    %v969 = vsub.f32 %v953, 0.1
    %v970 = vsub.f32 %v954, 0.1
    %v971 = vsub.f32 %v955, 0.1
    %v972 = vsub.f32 %v956, 0.1
    %v973 = vsub.f32 %v957, 0.1
    %v974 = vsub.f32 %v958, 0.1
    %v975 = vsub.f32 %v959, 0.1
    %v976 = vsub.f32 %v960, 0.1
    %v977 = vsub.f32 %v961, 0.1
    %v978 = vsub.f32 %v962, 0.1
    %v979 = vsub.f32 %v963, 0.1
    %v980 = vsub.f32 %v964, 0.1
    %v981 = vsub.f32 %v965, 0.1
    %v982 = vsub.f32 %v966, 0.1
    %v983 = vand.u32 2147483647, %v967
    %v984 = vand.u32 2147483647, %v968
    %v985 = vand.u32 2147483647, %v969
    %v986 = vand.u32 2147483647, %v970
    %v987 = vand.u32 2147483647, %v971
    %v988 = vand.u32 2147483647, %v972
    %v989 = vand.u32 2147483647, %v973
    %v990 = vand.u32 2147483647, %v974
    %v991 = vand.u32 2147483647, %v975
    %v992 = vand.u32 2147483647, %v976
    %v993 = vand.u32 2147483647, %v977
    %v994 = vand.u32 2147483647, %v978
    %v995 = vand.u32 2147483647, %v979
    %v996 = vand.u32 2147483647, %v980
    %v997 = vand.u32 2147483647, %v981
    %v998 = vand.u32 2147483647, %v982
    %v999 = vmul.f32 %v983, 1.767767
    %v1000 = vmul.f32 %v984, 1.767767
    %v1001 = vmul.f32 %v985, 1.767767
    %v1002 = vmul.f32 %v986, 1.767767
    %v1003 = vmul.f32 %v987, 1.767767
    %v1004 = vmul.f32 %v988, 1.767767
    %v1005 = vmul.f32 %v989, 1.767767
    %v1006 = vmul.f32 %v990, 1.767767
    %v1007 = vmul.f32 %v991, 1.767767
    %v1008 = vmul.f32 %v992, 1.767767
    %v1009 = vmul.f32 %v993, 1.767767
    %v1010 = vmul.f32 %v994, 1.767767
    %v1011 = vmul.f32 %v995, 1.767767
    %v1012 = vmul.f32 %v996, 1.767767
    %v1013 = vmul.f32 %v997, 1.767767
    %v1014 = vmul.f32 %v998, 1.767767
    %v1015 = vsub.f32 0.088388346, %v999
    %v1016 = vsub.f32 0.088388346, %v1000
    %v1017 = vsub.f32 0.088388346, %v1001
    %v1018 = vsub.f32 0.088388346, %v1002
    %v1019 = vsub.f32 0.088388346, %v1003
    %v1020 = vsub.f32 0.088388346, %v1004
    %v1021 = vsub.f32 0.088388346, %v1005
    %v1022 = vsub.f32 0.088388346, %v1006
    %v1023 = vsub.f32 0.088388346, %v1007
    %v1024 = vsub.f32 0.088388346, %v1008
    %v1025 = vsub.f32 0.088388346, %v1009
    %v1026 = vsub.f32 0.088388346, %v1010
    %v1027 = vsub.f32 0.088388346, %v1011
    %v1028 = vsub.f32 0.088388346, %v1012
    %v1029 = vsub.f32 0.088388346, %v1013
    %v1030 = vsub.f32 0.088388346, %v1014
    %v1031 = vlaneseq
    %v1032 = vshrl.u32 %v1031, 7
    %v1033 = vadd.s32 %v1032, 8
    %v1034 = vadd.s32 %v1032, 16
    %v1035 = vadd.s32 %v1032, 24
    %v1036 = vadd.s32 %v1032, 32
    %v1037 = vadd.s32 %v1032, 40
    %v1038 = vadd.s32 %v1032, 48
    %v1039 = vadd.s32 %v1032, 56
    %v1040 = vadd.s32 %v1032, 64
    %v1041 = vadd.s32 %v1032, 72
    %v1042 = vadd.s32 %v1032, 80
    %v1043 = vadd.s32 %v1032, 88
    %v1044 = vadd.s32 %v1032, 96
    %v1045 = vadd.s32 %v1032, 104
    %v1046 = vadd.s32 %v1032, 112
    %v1047 = vadd.s32 %v1032, 120
    %v1048 = vstv %s12
    %v1049 = vadd.s32 %v1048, %v1032
    %v1050 = vadd.s32 %v1048, %v1033
    %v1051 = vadd.s32 %v1048, %v1034
    %v1052 = vadd.s32 %v1048, %v1035
    %v1053 = vadd.s32 %v1048, %v1036
    %v1054 = vadd.s32 %v1048, %v1037
    %v1055 = vadd.s32 %v1048, %v1038
    %v1056 = vadd.s32 %v1048, %v1039
    %v1057 = vadd.s32 %v1048, %v1040
    %v1058 = vadd.s32 %v1048, %v1041
    %v1059 = vadd.s32 %v1048, %v1042
    %v1060 = vadd.s32 %v1048, %v1043
    %v1061 = vadd.s32 %v1048, %v1044
    %v1062 = vadd.s32 %v1048, %v1045
    %v1063 = vadd.s32 %v1048, %v1046
    %v1064 = vadd.s32 %v1048, %v1047
    %v1065 = vlaneseq
    %v1066 = vand.u32 %v1065, 127
    %vm1067 = vcmp.lt.s32.totalorder %v1049, 32
    %vm1068 = vcmp.lt.s32.totalorder %v1050, 32
    %vm1069 = vcmp.lt.s32.totalorder %v1051, 32
    %vm1070 = vcmp.lt.s32.totalorder %v1052, 32
    %vm1071 = vcmp.lt.s32.totalorder %v1053, 32
    %vm1072 = vcmp.lt.s32.totalorder %v1054, 32
    %vm1073 = vcmp.lt.s32.totalorder %v1055, 32
    %vm1074 = vcmp.lt.s32.totalorder %v1056, 32
    %vm1075 = vcmp.lt.s32.totalorder %v1057, 32
    %vm1076 = vcmp.lt.s32.totalorder %v1058, 32
    %vm1077 = vcmp.lt.s32.totalorder %v1059, 32
    %vm1078 = vcmp.lt.s32.totalorder %v1060, 32
    %vm1079 = vcmp.lt.s32.totalorder %v1061, 32
    %vm1080 = vcmp.lt.s32.totalorder %v1062, 32
    %vm1081 = vcmp.lt.s32.totalorder %v1063, 32
    %vm1082 = vcmp.lt.s32.totalorder %v1064, 32
    %vm1083 = vcmp.lt.s32.totalorder %v1066, 64
    %vm1084 = vmand %vm1067, %vm1083
    %vm1085 = vmand %vm1068, %vm1083
    %vm1086 = vmand %vm1069, %vm1083
    %vm1087 = vmand %vm1070, %vm1083
    %vm1088 = vmand %vm1071, %vm1083
    %vm1089 = vmand %vm1072, %vm1083
    %vm1090 = vmand %vm1073, %vm1083
    %vm1091 = vmand %vm1074, %vm1083
    %vm1092 = vmand %vm1075, %vm1083
    %vm1093 = vmand %vm1076, %vm1083
    %vm1094 = vmand %vm1077, %vm1083
    %vm1095 = vmand %vm1078, %vm1083
    %vm1096 = vmand %vm1079, %vm1083
    %vm1097 = vmand %vm1080, %vm1083
    %vm1098 = vmand %vm1081, %vm1083
    %vm1099 = vmand %vm1082, %vm1083
    %v1100 = vsel %vm1084, %v1015, 0.0
    %v1101 = vsel %vm1085, %v1016, 0.0
    %v1102 = vsel %vm1086, %v1017, 0.0
    %v1103 = vsel %vm1087, %v1018, 0.0
    %v1104 = vsel %vm1088, %v1019, 0.0
    %v1105 = vsel %vm1089, %v1020, 0.0
    %v1106 = vsel %vm1090, %v1021, 0.0
    %v1107 = vsel %vm1091, %v1022, 0.0
    %v1108 = vsel %vm1092, %v1023, 0.0
    %v1109 = vsel %vm1093, %v1024, 0.0
    %v1110 = vsel %vm1094, %v1025, 0.0
    %v1111 = vsel %vm1095, %v1026, 0.0
    %v1112 = vsel %vm1096, %v1027, 0.0
    %v1113 = vsel %vm1097, %v1028, 0.0
    %v1114 = vsel %vm1098, %v1029, 0.0
    %v1115 = vsel %vm1099, %v1030, 0.0
    %1116 = vst [vmem:[#allocation2] sm:$0xff] %v1100
    %1117 = vst [vmem:[#allocation2 + $0x8] sm:$0xff] %v1101
    %1118 = vst [vmem:[#allocation2 + $0x10] sm:$0xff] %v1102
    %1119 = vst [vmem:[#allocation2 + $0x18] sm:$0xff] %v1103
    %1120 = vst [vmem:[#allocation2 + $0x20] sm:$0xff] %v1104
    %1121 = vst [vmem:[#allocation2 + $0x28] sm:$0xff] %v1105
    %1122 = vst [vmem:[#allocation2 + $0x30] sm:$0xff] %v1106
    %1123 = vst [vmem:[#allocation2 + $0x38] sm:$0xff] %v1107
    %1124 = vst [vmem:[#allocation2 + $0x40] sm:$0xff] %v1108
    %1125 = vst [vmem:[#allocation2 + $0x48] sm:$0xff] %v1109
    %1126 = vst [vmem:[#allocation2 + $0x50] sm:$0xff] %v1110
    %1127 = vst [vmem:[#allocation2 + $0x58] sm:$0xff] %v1111
    %1128 = vst [vmem:[#allocation2 + $0x60] sm:$0xff] %v1112
    %1129 = vst [vmem:[#allocation2 + $0x68] sm:$0xff] %v1113
    %1130 = vst [vmem:[#allocation2 + $0x70] sm:$0xff] %v1114
    %1131 = vst [vmem:[#allocation2 + $0x78] sm:$0xff] %v1115
    // Predicated region
    $region10: #{tpu_custom_call.1} parent=1 // pred_check
      _
    $region11: #{tpu_custom_call.1} parent=1 // pred_check_branch
      %1133 = sbr.rel (0) target = $region13
    $region12: #{tpu_custom_call.1} parent=1 // pred_region
      %1135 = vsyncadd [#allocation3], 0
      %s1136 = sshll.u32 [#allocation2], 4
      %s1137 = int_to_ptr.vmem [resolvable:$true] %s1136
      %s1138 = sshll.u32 %s2, 4
      %s1139 = int_to_ptr.hbm [resolvable:$true] %s1138
      %1144 = dma.vmem_to_hbm [thread:$0]  %s1137, 2048, %s1139, [#allocation3], 128, 128, 8
    $region13: #{tpu_custom_call.1} parent=1 // pred_fallthru
      _
    // Predicated region
    $region14: #{tpu_custom_call.1} parent=1 // pred_check
      _
    $region15: #{tpu_custom_call.1} parent=1 // pred_check_branch
      %1146 = sbr.rel (0) target = $region17
    $region16: #{tpu_custom_call.1} parent=1 // pred_region
      %1148 = dma.done [#allocation3], 2048
    $region17: #{tpu_custom_call.1} parent=1 // pred_fallthru
      _
    %1149 = vsyncpa [#allocation3], 1

</llo_original>
